<compile_context>
chip_gen: v7x
topology: tpu7x:2x2x1
jax: 0.10.0
libtpu: 0.0.40
codegen_flags: <defaults>
</compile_context>

<pallas_src>
import functools

import jax
import jax.numpy as jnp
from jax import lax
from jax.experimental import pallas as pl
from jax.experimental.pallas import tpu as pltpu


def _round_up(a, b):
    return (a + b - 1) // b * b


def _default_vmem_limit_bytes():
    """Generation-aware scoped-VMEM limit with headroom (v7x has only 64 MiB)."""
    cap = 128 * 1024 * 1024
    try:
        cap = int(getattr(pltpu.get_tpu_info(), "vmem_capacity_bytes", cap)) or cap
    except Exception:
        pass
    return int(max(32 * 1024 * 1024, min(cap - 12 * 1024 * 1024, 80 * 1024 * 1024)))


def _layer_norm_rows(x_ref, gamma_ref, beta_ref, *, eps, d_true):
    """LayerNorm of a full-width row tile with PyTorch-module semantics.

    Unbiased std (N-1); eps added to std.  Padded lane columns (>= d_true)
    are masked out of the reductions; gamma/beta are zero-padded by the
    wrapper so padded output columns are exactly 0.
    Returns (x_norm_f32, x_f32).
    """
    x = x_ref[...].astype(jnp.float32)
    d_pad = x.shape[-1]
    mean = jnp.sum(x, axis=-1, keepdims=True) * (1.0 / d_true)
    centered = x - mean
    if d_pad != d_true:
        lane = lax.broadcasted_iota(jnp.int32, x.shape, dimension=1)
        centered = jnp.where(lane < d_true, centered, 0.0)
    var = jnp.sum(centered * centered, axis=-1, keepdims=True) * (
        1.0 / max(d_true - 1, 1))
    # Exact reciprocal: LN runs once per row tile and is off the MXU critical
    # path, so the approx EUP reciprocal is not worth the accuracy loss.
    inv = 1.0 / (jnp.sqrt(var) + eps)
    gamma = gamma_ref[...].astype(jnp.float32)
    beta = beta_ref[...].astype(jnp.float32)
    return centered * (gamma * inv) + beta, x


def _resident_kernel(x_ref, gamma_ref, beta_ref, w_ref, b_ref, o_ref, *,
                     eps, d_true):
    """W fully VMEM-resident; grid = (row_tiles,)."""
    xnorm, x_f32 = _layer_norm_rows(x_ref, gamma_ref, beta_ref,
                                    eps=eps, d_true=d_true)
    w = w_ref[...]
    y = jnp.dot(xnorm.astype(w.dtype), w, preferred_element_type=jnp.float32)
    y = y + b_ref[...].astype(jnp.float32)
    # dropout: eval-mode identity.
    # TODO(synk): training-mode dropout (pltpu.prng_random_bits mask) not emitted.
    o_ref[...] = (x_f32 + y).astype(o_ref.dtype)


def _tiled_kernel(x_ref, xcol_ref, gamma_ref, beta_ref, w_ref, b_ref, o_ref,
                  xnorm_ref, *, eps, d_true):
    """W streamed in column tiles; grid = (row_tiles, col_tiles).

    LayerNorm of the current row tile is computed once (j == 0) into VMEM
    scratch (in the matmul operand dtype, so no per-j re-cast) and reused for
    every W column tile.  The residual uses a separately-blocked x column slab
    to keep the output lane-dense without dynamic lane slicing.
    """
    j = pl.program_id(1)

    @pl.when(j == 0)
    def _():
        xnorm, _ = _layer_norm_rows(x_ref, gamma_ref, beta_ref,
                                    eps=eps, d_true=d_true)
        xnorm_ref[...] = xnorm.astype(xnorm_ref.dtype)

    w = w_ref[...]
    xn = xnorm_ref[...]
    if xn.dtype != w.dtype:   # no-op when scratch dtype == operand dtype
        xn = xn.astype(w.dtype)
    y = jnp.dot(xn, w, preferred_element_type=jnp.float32)
    y = y + b_ref[...].astype(jnp.float32)
    # dropout: eval-mode identity (see TODO above).
    o_ref[...] = (xcol_ref[...].astype(jnp.float32) + y).astype(o_ref.dtype)


def sublayer_forward(x, gamma, beta, w, b, *, eps=1e-6, row_tile=512,
                     col_tile=512, matmul_dtype=jnp.bfloat16,
                     max_resident_w_bytes=12 * 1024 * 1024,
                     vmem_limit_bytes=None):
    """x: (batch, seq, d_model). Returns same shape/dtype as x.

    matmul_dtype=None keeps f32 MXU operands (bit-closer to the PyTorch
    module); the bf16 default halves W DMA/VMEM and feeds the MXU natively.
    """
    batch, seq, d_model = x.shape
    rows = batch * seq
    out_dtype = x.dtype

    op_dtype = jnp.float32 if matmul_dtype is None else matmul_dtype
    op_bytes = jnp.dtype(op_dtype).itemsize
    out_bytes = jnp.dtype(out_dtype).itemsize

    if vmem_limit_bytes is None:
        vmem_limit_bytes = _default_vmem_limit_bytes()

    # Lane-dense layout: pad d_model up to a multiple of 128.
    d_pad = _round_up(d_model, 128)

    # W residency: DMA the whole (padded) weight once if it fits comfortably.
    resident = d_pad * d_pad * op_bytes <= max_resident_w_bytes

    # Column tile (streamed path): prefer the largest 256-multiple divisor of
    # d_pad within col_tile (v6e/v7x MXU is 2x256^2); fall back to 128s.
    if resident:
        tn = d_pad
    else:
        tn = None
        c = (min(max(col_tile, 256), d_pad) // 256) * 256
        while c >= 256:
            if d_pad % c == 0:
                tn = c
                break
            c -= 256
        if tn is None:
            c = (min(max(col_tile, 128), d_pad) // 128) * 128
            while c >= 128:
                if d_pad % c == 0:
                    tn = c
                    break
                c -= 128
        if tn is None:   # unreachable: d_pad is a multiple of 128
            tn = 128
    n_col = d_pad // tn

    # Row tile: as large as VMEM allows (W is re-streamed once per row tile
    # when column-tiled, so bigger tm => higher arithmetic intensity).
    tm = min(_round_up(rows, 8), _round_up(row_tile, 8))

    x_bytes = 4  # LN / residual math in f32

    def working_set(tm_):
        ws = 2 * tm_ * d_pad * x_bytes            # full-width x tile (dbl buf)
        ws += 2 * tm_ * tn * out_bytes            # output tile (dbl buf)
        if resident:
            ws += 2 * d_pad * d_pad * op_bytes    # resident W (conservative x2)
        else:
            ws += 2 * d_pad * tn * op_bytes       # streamed W column tile
            ws += 2 * tm_ * tn * x_bytes          # residual x column slab
            ws += tm_ * d_pad * op_bytes          # xnorm scratch
        return ws

    while tm > 64 and working_set(tm) > int(0.7 * vmem_limit_bytes):
        tm = _round_up(tm // 2, 8)

    # Guarantee >= 2 row tiles so the 'parallel' row axis can shard across
    # TensorCores (v7x has 2 TCs per chip; otherwise one sits idle).
    if rows > 8 and _round_up(rows, tm) // tm < 2:
        tm = max(8, _round_up(pl.cdiv(rows, 2), 8))

    rows_padded = _round_up(rows, tm)
    n_row = rows_padded // tm

    # ---- wrapper-side padding / casts -------------------------------------
    pad_r = rows_padded - rows
    pad_c = d_pad - d_model
    x2 = x.reshape(rows, d_model)
    if pad_r or pad_c:
        x2 = jnp.pad(x2, ((0, pad_r), (0, pad_c)))
    gamma2 = jnp.pad(gamma, (0, pad_c)).reshape(1, d_pad)
    beta2 = jnp.pad(beta, (0, pad_c)).reshape(1, d_pad)
    b2 = jnp.pad(b, (0, pad_c)).reshape(1, d_pad)
    w2 = jnp.pad(w, ((0, pad_c), (0, pad_c))).astype(op_dtype)

    # Advisory cost hint so XLA schedules the surrounding pads/reshapes well.
    w_passes = 1 if resident else n_row
    cost = pl.CostEstimate(
        flops=2 * rows_padded * d_pad * d_pad + 8 * rows_padded * d_pad,
        transcendentals=2 * rows_padded,
        bytes_accessed=(rows_padded * d_pad * x_bytes * (1 if resident else 2)
                        + w_passes * d_pad * d_pad * op_bytes
                        + rows_padded * d_pad * out_bytes
                        + 3 * d_pad * 4),
    )

    if resident:
        kernel = functools.partial(_resident_kernel, eps=eps, d_true=d_model)
        grid_spec = pltpu.PrefetchScalarGridSpec(
            num_scalar_prefetch=0,
            grid=(n_row,),
            in_specs=[
                pl.BlockSpec((tm, d_pad), lambda i: (i, 0)),      # x row tile
                pl.BlockSpec((1, d_pad), lambda i: (0, 0)),       # gamma
                pl.BlockSpec((1, d_pad), lambda i: (0, 0)),       # beta
                pl.BlockSpec((d_pad, d_pad), lambda i: (0, 0)),   # W (resident)
                pl.BlockSpec((1, d_pad), lambda i: (0, 0)),       # bias
            ],
            out_specs=pl.BlockSpec((tm, d_pad), lambda i: (i, 0)),
        )
        dim_sem = ("parallel",)
        operands = (x2, gamma2, beta2, w2, b2)
    else:
        kernel = functools.partial(_tiled_kernel, eps=eps, d_true=d_model)
        grid_spec = pltpu.PrefetchScalarGridSpec(
            num_scalar_prefetch=0,
            grid=(n_row, n_col),
            in_specs=[
                # Full-width x tile (LN reduction); block index constant across
                # j => stays VMEM-resident for the whole column sweep.
                pl.BlockSpec((tm, d_pad), lambda i, j: (i, 0)),
                # x column slab for the residual add (lane-dense, no dynamic
                # lane slicing; costs one extra pass over x total).
                pl.BlockSpec((tm, tn), lambda i, j: (i, j)),
                pl.BlockSpec((1, d_pad), lambda i, j: (0, 0)),    # gamma
                pl.BlockSpec((1, d_pad), lambda i, j: (0, 0)),    # beta
                pl.BlockSpec((d_pad, tn), lambda i, j: (0, j)),   # W column tile
                pl.BlockSpec((1, tn), lambda i, j: (0, j)),       # bias tile
            ],
            out_specs=pl.BlockSpec((tm, tn), lambda i, j: (i, j)),
            scratch_shapes=[pltpu.VMEM((tm, d_pad), op_dtype)],
        )
        dim_sem = ("parallel", "arbitrary")
        operands = (x2, x2, gamma2, beta2, w2, b2)

    out2 = pl.pallas_call(
        kernel,
        out_shape=jax.ShapeDtypeStruct((rows_padded, d_pad), out_dtype),
        grid_spec=grid_spec,
        compiler_params=pltpu.CompilerParams(
            dimension_semantics=dim_sem,
            vmem_limit_bytes=int(vmem_limit_bytes),
        ),
        cost_estimate=cost,
    )(*operands)

    if pad_r or pad_c:
        out2 = out2[:rows, :d_model]
    return out2.reshape(batch, seq, d_model)


def _reference(x, gamma, beta, w, b, eps=1e-6):
    """Pure-JAX reference mirroring the PyTorch module (eval mode)."""
    mean = jnp.mean(x, axis=-1, keepdims=True)
    centered = x - mean
    d = x.shape[-1]
    std = jnp.sqrt(jnp.sum(centered * centered, axis=-1, keepdims=True) / (d - 1))
    x_norm = gamma * centered / (std + eps) + beta
    # HIGHEST precision so the reference is not polluted by the TPU default
    # bf16 dot; tolerances below are sized for the kernel's bf16 operands.
    y = jnp.einsum("bsd,de->bse", x_norm, w,
                   precision=lax.Precision.HIGHEST) + b
    return x + y


if __name__ == "__main__":
    # Small demo shapes consistent with the module.
    batch, seq, d_model = 2, 8, 32

    key = jax.random.PRNGKey(0)
    kx, kw, kb, kg, kbt, kx2, kw2, kb2 = jax.random.split(key, 8)

    x = jax.random.normal(kx, (batch, seq, d_model), dtype=jnp.float32)

    # LayerNorm params (init is ones/zeros; perturb slightly to exercise them).
    gamma = 1.0 + 0.1 * jax.random.normal(kg, (d_model,), dtype=jnp.float32)
    beta = 0.1 * jax.random.normal(kbt, (d_model,), dtype=jnp.float32)

    # Deterministic Linear(d_model, d_model) acting as main_logic.
    w = jax.random.normal(kw, (d_model, d_model), dtype=jnp.float32) * 0.05
    b = jax.random.normal(kb, (d_model,), dtype=jnp.float32) * 0.05

    ref = _reference(x, gamma, beta, w, b)

    # Default (bf16 MXU operands, f32 accumulation) -> W-resident fast path.
    out = jax.block_until_ready(sublayer_forward(x, gamma, beta, w, b))
    assert out.shape == (batch, seq, d_model)
    assert jnp.allclose(out, ref, atol=3e-2, rtol=3e-2), "mismatch (bf16 path)"

    # f32 opt-in path (closest to the PyTorch module's numerics).
    out_f32 = jax.block_until_ready(
        sublayer_forward(x, gamma, beta, w, b, matmul_dtype=None))
    assert jnp.allclose(out_f32, ref, atol=1e-2, rtol=1e-2), "mismatch (f32 path)"

    # Non-dividing row count exercises the padded-tail rows path.
    x_odd = jax.random.normal(kx2, (3, 5, d_model), dtype=jnp.float32)
    out_odd = jax.block_until_ready(sublayer_forward(x_odd, gamma, beta, w, b))
    assert jnp.allclose(out_odd, _reference(x_odd, gamma, beta, w, b),
                        atol=3e-2, rtol=3e-2), "mismatch (tail path)"

    # Multi-tile grid (row tiles x W column tiles): forces the streamed-W
    # kernel with LN scratch reuse (max_resident_w_bytes=0 disables residency).
    d_big = 512
    xb = jax.random.normal(kx2, (2, 64, d_big), dtype=jnp.float32)
    gb = jnp.ones((d_big,), jnp.float32)
    bb = jnp.zeros((d_big,), jnp.float32)
    wb = jax.random.normal(kw2, (d_big, d_big), dtype=jnp.float32) * 0.02
    bbias = jax.random.normal(kb2, (d_big,), dtype=jnp.float32) * 0.02
    out_big = jax.block_until_ready(
        sublayer_forward(xb, gb, bb, wb, bbias, row_tile=64, col_tile=256,
                         max_resident_w_bytes=0))
    assert jnp.allclose(out_big, _reference(xb, gb, bb, wb, bbias),
                        atol=3e-2, rtol=3e-2), "mismatch (tiled path)"

    print("KERNEL_OK")
</pallas_src>

<mosaic_0001>
module attributes {stable_mosaic.version = 11 : i64} {
  func.func @_resident_kernel(%arg0: i32, %arg1: memref<8x128xf32, #tpu.memory_space<vmem>>, %arg2: memref<1x128xf32, #tpu.memory_space<vmem>>, %arg3: memref<1x128xf32, #tpu.memory_space<vmem>>, %arg4: memref<128x128xbf16, #tpu.memory_space<vmem>>, %arg5: memref<1x128xf32, #tpu.memory_space<vmem>>, %arg6: memref<8x128xf32, #tpu.memory_space<vmem>>) attributes {dimension_semantics = [#tpu.dimension_semantics<parallel>], iteration_bounds = array<i64: 2>, scalar_prefetch = 0 : i64, scratch_operands = 0 : i64, tpu.core_type = #tpu.core_type<tc>, window_params = [{transform_indices = @transform_0, window_bounds = array<i64: 8, 128>}, {pipeline_mode = #tpu.pipeline_mode<synchronous>, transform_indices = @transform_1, window_bounds = array<i64: 1, 128>}, {pipeline_mode = #tpu.pipeline_mode<synchronous>, transform_indices = @transform_2, window_bounds = array<i64: 1, 128>}, {pipeline_mode = #tpu.pipeline_mode<synchronous>, transform_indices = @transform_3, window_bounds = array<i64: 128, 128>}, {pipeline_mode = #tpu.pipeline_mode<synchronous>, transform_indices = @transform_4, window_bounds = array<i64: 1, 128>}, {transform_indices = @transform_5, window_bounds = array<i64: 8, 128>}]} {
    %c0 = arith.constant 0 : index
    %c0_0 = arith.constant 0 : index
    %0 = vector.load %arg1[%c0, %c0_0] : memref<8x128xf32, #tpu.memory_space<vmem>>, vector<8x128xf32>
    %cst = arith.constant dense<0.000000e+00> : vector<8xf32>
    %1 = vector.multi_reduction <add>, %0, %cst [1] : vector<8x128xf32> to vector<8xf32>
    %2 = vector.shape_cast %1 : vector<8xf32> to vector<8x1xf32>
    %cst_1 = arith.constant 3.125000e-02 : f32
    %3 = vector.broadcast %cst_1 : f32 to vector<8x1xf32>
    %4 = arith.mulf %2, %3 : vector<8x1xf32>
    %5 = vector.broadcast %4 : vector<8x1xf32> to vector<8x128xf32>
    %6 = arith.subf %0, %5 : vector<8x128xf32>
    %7 = tpu.iota {dimensions = array<i32: 1>} : vector<8x128xi32>
    %c32_i32 = arith.constant 32 : i32
    %8 = vector.broadcast %c32_i32 : i32 to vector<8x128xi32>
    %9 = arith.cmpi slt, %7, %8 : vector<8x128xi32>
    %cst_2 = arith.constant 0.000000e+00 : f32
    %10 = vector.broadcast %cst_2 : f32 to vector<8x128xf32>
    %11 = arith.select %9, %6, %10 : vector<8x128xi1>, vector<8x128xf32>
    %12 = arith.mulf %11, %11 : vector<8x128xf32>
    %cst_3 = arith.constant dense<0.000000e+00> : vector<8xf32>
    %13 = vector.multi_reduction <add>, %12, %cst_3 [1] : vector<8x128xf32> to vector<8xf32>
    %14 = vector.shape_cast %13 : vector<8xf32> to vector<8x1xf32>
    %cst_4 = arith.constant 0.0322580636 : f32
    %15 = vector.broadcast %cst_4 : f32 to vector<8x1xf32>
    %16 = arith.mulf %14, %15 : vector<8x1xf32>
    %17 = math.sqrt %16 : vector<8x1xf32>
    %cst_5 = arith.constant 9.99999997E-7 : f32
    %18 = vector.broadcast %cst_5 : f32 to vector<8x1xf32>
    %19 = arith.addf %17, %18 : vector<8x1xf32>
    %cst_6 = arith.constant 1.000000e+00 : f32
    %20 = vector.broadcast %cst_6 : f32 to vector<8x1xf32>
    %21 = arith.divf %20, %19 : vector<8x1xf32>
    %c0_7 = arith.constant 0 : index
    %c0_8 = arith.constant 0 : index
    %22 = vector.load %arg2[%c0_7, %c0_8] : memref<1x128xf32, #tpu.memory_space<vmem>>, vector<1x128xf32>
    %c0_9 = arith.constant 0 : index
    %c0_10 = arith.constant 0 : index
    %23 = vector.load %arg3[%c0_9, %c0_10] : memref<1x128xf32, #tpu.memory_space<vmem>>, vector<1x128xf32>
    %24 = vector.broadcast %22 : vector<1x128xf32> to vector<8x128xf32>
    %25 = vector.broadcast %21 : vector<8x1xf32> to vector<8x128xf32>
    %26 = arith.mulf %24, %25 : vector<8x128xf32>
    %27 = arith.mulf %11, %26 : vector<8x128xf32>
    %28 = vector.broadcast %23 : vector<1x128xf32> to vector<8x128xf32>
    %29 = arith.addf %27, %28 : vector<8x128xf32>
    %c0_11 = arith.constant 0 : index
    %c0_12 = arith.constant 0 : index
    %30 = vector.load %arg4[%c0_11, %c0_12] : memref<128x128xbf16, #tpu.memory_space<vmem>>, vector<128x128xbf16>
    %31 = arith.truncf %29 : vector<8x128xf32> to vector<8x128xbf16>
    %cst_13 = arith.constant dense<0.000000e+00> : vector<8x128xf32>
    %32 = tpu.matmul %31, %30, %cst_13 {dimension_numbers = #tpu.dot_dimension_numbers<[1], [0], [0], [1], [0, 0, 1, 1], [], []>} : vector<8x128xbf16>, vector<128x128xbf16>, vector<8x128xf32> -> vector<8x128xf32>
    %c0_14 = arith.constant 0 : index
    %c0_15 = arith.constant 0 : index
    %33 = vector.load %arg5[%c0_14, %c0_15] : memref<1x128xf32, #tpu.memory_space<vmem>>, vector<1x128xf32>
    %34 = vector.broadcast %33 : vector<1x128xf32> to vector<8x128xf32>
    %35 = arith.addf %32, %34 : vector<8x128xf32>
    %36 = arith.addf %0, %35 : vector<8x128xf32>
    %c0_16 = arith.constant 0 : index
    %c0_17 = arith.constant 0 : index
    %37 = vector.load %arg6[%c0_16, %c0_17] : memref<8x128xf32, #tpu.memory_space<vmem>>, vector<8x128xf32>
    tpu.vector_store %arg6[%c0_16, %c0_17], %36 {strides = array<i32>} : memref<8x128xf32, #tpu.memory_space<vmem>>, vector<8x128xf32>,
    return
  }
  func.func @transform_0(%arg0: i32) -> (i32, i32) {
    %c0_i32 = arith.constant 0 : i32
    %c0_i32_0 = arith.constant 0 : i32
    return %arg0, %c0_i32 : i32, i32
  }
  func.func @transform_1(%arg0: i32) -> (i32, i32) {
    %c0_i32 = arith.constant 0 : i32
    %c0_i32_0 = arith.constant 0 : i32
    %c0_i32_1 = arith.constant 0 : i32
    return %c0_i32, %c0_i32_0 : i32, i32
  }
  func.func @transform_2(%arg0: i32) -> (i32, i32) {
    %c0_i32 = arith.constant 0 : i32
    %c0_i32_0 = arith.constant 0 : i32
    %c0_i32_1 = arith.constant 0 : i32
    return %c0_i32, %c0_i32_0 : i32, i32
  }
  func.func @transform_3(%arg0: i32) -> (i32, i32) {
    %c0_i32 = arith.constant 0 : i32
    %c0_i32_0 = arith.constant 0 : i32
    %c0_i32_1 = arith.constant 0 : i32
    return %c0_i32, %c0_i32_0 : i32, i32
  }
  func.func @transform_4(%arg0: i32) -> (i32, i32) {
    %c0_i32 = arith.constant 0 : i32
    %c0_i32_0 = arith.constant 0 : i32
    %c0_i32_1 = arith.constant 0 : i32
    return %c0_i32, %c0_i32_0 : i32, i32
  }
  func.func @transform_5(%arg0: i32) -> (i32, i32) {
    %c0_i32 = arith.constant 0 : i32
    %c0_i32_0 = arith.constant 0 : i32
    return %arg0, %c0_i32 : i32, i32
  }
}

</mosaic_0001>

<llo_original>
// kernel: tpu_custom_call.1
$region0: #{tpu_custom_call.1}
  #allocation0 [shape = 'u32[]', space=smem, size = 0x4, offset = 0x4, fixed_abs, tag = 'smem constant byte address 0x4 - core index']
  #allocation1 [shape = 'u32[144,128]{1,0:T(1,128)}', space=vmem, size = 0x12000, scoped, tag = 'internal scratch']
  %s0 = inlined_call_operand.hbm [shape: f32[16,128], index: 0, kind: input, shape index: {}]
  %s1 = inlined_call_operand.hbm [shape: f32[1,128], index: 1, kind: input, shape index: {}]
  %s2 = inlined_call_operand.hbm [shape: f32[1,128], index: 2, kind: input, shape index: {}]
  %s3 = inlined_call_operand.hbm [shape: bf16[128,128], index: 3, kind: input, shape index: {}]
  %s4 = inlined_call_operand.hbm [shape: f32[1,128], index: 4, kind: input, shape index: {}]
  %s5 = inlined_call_operand.hbm [shape: f32[16,128], index: 5, kind: output, shape index: {}]
  %s6 = sld [smem:[#allocation0]]
  $region73: #{tpu_custom_call.1} parent=0
    _
  %s8 = ssub.s32 1, %s6
  %s9 = scalar_select 0, %s8, %s6
  $region1: #{tpu_custom_call.1} parent=0
    #allocation2 [shape = 'u8[8192]{0}', space=vmem, size = 0x2000, scoped, tag = 'input window, operand 0']
    #allocation3 [shape = 's32[2]{0}', space=sflag, size = 0x8, scoped, tag = 'scoped memory for tpu_custom_call.1']
    #allocation4 [shape = 's32[2]{0}', space=sflag, size = 0x8, scoped, tag = 'scoped memory for tpu_custom_call.1']
    #allocation5 [shape = 'u8[512]{0}', space=vmem, size = 0x400, scoped, tag = 'input window, operand 1, single buffered']
    #allocation6 [shape = 's32[1]{0}', space=sflag, size = 0x4, scoped, tag = 'scoped memory for tpu_custom_call.1']
    #allocation7 [shape = 'u8[512]{0}', space=vmem, size = 0x400, scoped, tag = 'input window, operand 2, single buffered']
    #allocation8 [shape = 'u8[32768]{0}', space=vmem, size = 0x8000, scoped, tag = 'input window, operand 3, single buffered']
    #allocation9 [shape = 's32[1]{0}', space=sflag, size = 0x4, scoped, tag = 'scoped memory for tpu_custom_call.1']
    #allocation10 [shape = 'u8[512]{0}', space=vmem, size = 0x400, scoped, tag = 'input window, operand 4, single buffered']
    #allocation11 [shape = 'u8[8192]{0}', space=vmem, size = 0x2000, scoped, tag = 'output window, operand 0']
    %10 = vsyncpa [#allocation3], 0
    %s11 = scalar_lea.sflag [#allocation3], 1
    %12 = vsyncpa %s11, 0
    %13 = vsyncpa [#allocation6], 0
    %14 = vsyncpa [#allocation9], 0
    %15 = vsyncpa [#allocation4], 0
    %s16 = scalar_lea.sflag [#allocation4], 1
    %17 = vsyncpa %s16, 0
    loop: start=0, step=1, limit=4
    $region2: #{tpu_custom_call.1} parent=1 // loop_pre_header
      _
    $region3: #{tpu_custom_call.1} parent=1 // loop_header
      %s19 = sphi 0, %s23
      %p20 = scmp.ge.s32.totalorder %s19, 4
      %s29 = sphi 0, %s31
      %s32 = sphi 0, %s29
      %s33 = sphi 0, %s32
      %s49 = sphi 0, %s33
      %s53 = sphi 0, %s53
      %s55 = sphi 0, %s53
      %s56 = sphi 0, %s55
      %s70 = sphi 0, %s56
      %s74 = sphi 0, %s74
      %s76 = sphi 0, %s74
      %s77 = sphi 0, %s76
      %s91 = sphi 0, %s77
      %s95 = sphi 0, %s95
      %s97 = sphi 0, %s95
      %s98 = sphi 0, %s97
      %s112 = sphi 0, %s98
      %s116 = sphi 0, %s116
      %s118 = sphi 0, %s116
      %s119 = sphi 0, %s118
      %s133 = sphi 0, %s119
      %s139 = sphi 0, %s141
      %s142 = sphi 0, %s139
      %s143 = sphi 0, %s142
      %s159 = sphi 0, %s143
    $region4: #{tpu_custom_call.1} parent=1 // loop_header_branch
      %22 = sbr.rel (%p20) target = $region8
    $region5: #{tpu_custom_call.1} parent=1 // loop_body
      %s24 = ssub.s32 %s19, 1
      %s25 = ssub.s32 %s19, 2
      %s26 = sadd.s32 %s19, 1
      %s27 = ssub.s32 %s19, %s26
      %p28 = scmp.eq.s32.totalorder %s27, 0
      %s30 = sadd.s32 %s29, 1
      %s31 = scalar_select %p28, %s29, %s30
      %p34 = pneg %p28
      %p35 = scmp.eq.s32.totalorder %s19, 1
      %p36 = por %p34, %p35
      %p37 = scmp.ne.s32.totalorder %s29, %s32
      %p38 = scmp.eq.s32.totalorder %s19, 0
      %p39 = por %p37, %p38
      %p40 = scmp.ne.s32.totalorder %s29, %s32
      %p41 = scmp.eq.s32.totalorder %s24, 1
      %p42 = por %p40, %p41
      %p43 = scmp.ne.s32.totalorder %s32, %s33
      %p44 = scmp.eq.s32.totalorder %s24, 0
      %p45 = por %p43, %p44
      %p46 = scmp.ne.s32.totalorder %s32, %s33
      %p47 = scmp.eq.s32.totalorder %s25, 1
      %p48 = por %p46, %p47
      %p50 = scmp.ne.s32.totalorder %s33, %s49
      %p51 = scmp.eq.s32.totalorder %s25, 0
      %p52 = por %p50, %p51
      %s54 = sadd.s32 %s53, 1
      %p57 = scmp.eq.s32.totalorder %s19, 1
      %p58 = scmp.ne.s32.totalorder %s53, %s55
      %p59 = scmp.eq.s32.totalorder %s19, 0
      %p60 = por %p58, %p59
      %p61 = scmp.ne.s32.totalorder %s53, %s55
      %p62 = scmp.eq.s32.totalorder %s24, 1
      %p63 = por %p61, %p62
      %p64 = scmp.ne.s32.totalorder %s55, %s56
      %p65 = scmp.eq.s32.totalorder %s24, 0
      %p66 = por %p64, %p65
      %p67 = scmp.ne.s32.totalorder %s55, %s56
      %p68 = scmp.eq.s32.totalorder %s25, 1
      %p69 = por %p67, %p68
      %p71 = scmp.ne.s32.totalorder %s56, %s70
      %p72 = scmp.eq.s32.totalorder %s25, 0
      %p73 = por %p71, %p72
      %s75 = sadd.s32 %s74, 1
      %p78 = scmp.eq.s32.totalorder %s19, 1
      %p79 = scmp.ne.s32.totalorder %s74, %s76
      %p80 = scmp.eq.s32.totalorder %s19, 0
      %p81 = por %p79, %p80
      %p82 = scmp.ne.s32.totalorder %s74, %s76
      %p83 = scmp.eq.s32.totalorder %s24, 1
      %p84 = por %p82, %p83
      %p85 = scmp.ne.s32.totalorder %s76, %s77
      %p86 = scmp.eq.s32.totalorder %s24, 0
      %p87 = por %p85, %p86
      %p88 = scmp.ne.s32.totalorder %s76, %s77
      %p89 = scmp.eq.s32.totalorder %s25, 1
      %p90 = por %p88, %p89
      %p92 = scmp.ne.s32.totalorder %s77, %s91
      %p93 = scmp.eq.s32.totalorder %s25, 0
      %p94 = por %p92, %p93
      %s96 = sadd.s32 %s95, 1
      %p99 = scmp.eq.s32.totalorder %s19, 1
      %p100 = scmp.ne.s32.totalorder %s95, %s97
      %p101 = scmp.eq.s32.totalorder %s19, 0
      %p102 = por %p100, %p101
      %p103 = scmp.ne.s32.totalorder %s95, %s97
      %p104 = scmp.eq.s32.totalorder %s24, 1
      %p105 = por %p103, %p104
      %p106 = scmp.ne.s32.totalorder %s97, %s98
      %p107 = scmp.eq.s32.totalorder %s24, 0
      %p108 = por %p106, %p107
      %p109 = scmp.ne.s32.totalorder %s97, %s98
      %p110 = scmp.eq.s32.totalorder %s25, 1
      %p111 = por %p109, %p110
      %p113 = scmp.ne.s32.totalorder %s98, %s112
      %p114 = scmp.eq.s32.totalorder %s25, 0
      %p115 = por %p113, %p114
      %s117 = sadd.s32 %s116, 1
      %p120 = scmp.eq.s32.totalorder %s19, 1
      %p121 = scmp.ne.s32.totalorder %s116, %s118
      %p122 = scmp.eq.s32.totalorder %s19, 0
      %p123 = por %p121, %p122
      %p124 = scmp.ne.s32.totalorder %s116, %s118
      %p125 = scmp.eq.s32.totalorder %s24, 1
      %p126 = por %p124, %p125
      %p127 = scmp.ne.s32.totalorder %s118, %s119
      %p128 = scmp.eq.s32.totalorder %s24, 0
      %p129 = por %p127, %p128
      %p130 = scmp.ne.s32.totalorder %s118, %s119
      %p131 = scmp.eq.s32.totalorder %s25, 1
      %p132 = por %p130, %p131
      %p134 = scmp.ne.s32.totalorder %s119, %s133
      %p135 = scmp.eq.s32.totalorder %s25, 0
      %p136 = por %p134, %p135
      %s137 = ssub.s32 %s19, %s26
      %p138 = scmp.eq.s32.totalorder %s137, 0
      %s140 = sadd.s32 %s139, 1
      %s141 = scalar_select %p138, %s139, %s140
      %p144 = pneg %p138
      %p145 = scmp.eq.s32.totalorder %s19, 1
      %p146 = por %p144, %p145
      %p147 = scmp.ne.s32.totalorder %s139, %s142
      %p148 = scmp.eq.s32.totalorder %s19, 0
      %p149 = por %p147, %p148
      %p150 = scmp.ne.s32.totalorder %s139, %s142
      %p151 = scmp.eq.s32.totalorder %s24, 1
      %p152 = por %p150, %p151
      %p153 = scmp.ne.s32.totalorder %s142, %s143
      %p154 = scmp.eq.s32.totalorder %s24, 0
      %p155 = por %p153, %p154
      %p156 = scmp.ne.s32.totalorder %s142, %s143
      %p157 = scmp.eq.s32.totalorder %s25, 1
      %p158 = por %p156, %p157
      %p160 = scmp.ne.s32.totalorder %s143, %s159
      %p161 = scmp.eq.s32.totalorder %s25, 0
      %p162 = por %p160, %p161
      %p163 = scmp.le.s32.totalorder 1, %s19
      %p164 = scmp.lt.s32.totalorder %s19, 3
      %p165 = pnand %p163, %p164
      %p166 = pneg %p165
      // Predicated region
      $region9: #{tpu_custom_call.1} parent=5 // pred_check
        _
      $region10: #{tpu_custom_call.1} parent=5 // pred_check_branch
        %168 = sbr.rel (%p165) target = $region12
      $region11: #{tpu_custom_call.1} parent=5 // pred_region
        %s169 = ssub.s32 %s19, 1
        // Predicated region
        $region13: #{tpu_custom_call.1} parent=11 // pred_check
          %p170 = pneg %p66
        $region14: #{tpu_custom_call.1} parent=11 // pred_check_branch
          %172 = sbr.rel (%p170) target = $region16
        $region15: #{tpu_custom_call.1} parent=11 // pred_region
          %s174 = ssub.s32 16, 16
          %175 = vsyncadd [#allocation6], %s174
          %s177 = sshll.u32 [#allocation5], 4
          %s178 = int_to_ptr.vmem [resolvable:$true] %s177
          %180 = dma.hbm_to_vmem [thread:$0]  %s1, 16, %s178, [#allocation6]
        $region16: #{tpu_custom_call.1} parent=11 // pred_fallthru
          _
        // Predicated region
        $region17: #{tpu_custom_call.1} parent=11 // pred_check
          %p181 = pneg %p87
        $region18: #{tpu_custom_call.1} parent=11 // pred_check_branch
          %183 = sbr.rel (%p181) target = $region20
        $region19: #{tpu_custom_call.1} parent=11 // pred_region
          %s185 = ssub.s32 16, 16
          %186 = vsyncadd [#allocation6], %s185
          %s188 = sshll.u32 [#allocation7], 4
          %s189 = int_to_ptr.vmem [resolvable:$true] %s188
          %191 = dma.hbm_to_vmem [thread:$0]  %s2, 16, %s189, [#allocation6]
        $region20: #{tpu_custom_call.1} parent=11 // pred_fallthru
          _
        // Predicated region
        $region21: #{tpu_custom_call.1} parent=11 // pred_check
          %p192 = pneg %p108
        $region22: #{tpu_custom_call.1} parent=11 // pred_check_branch
          %194 = sbr.rel (%p192) target = $region24
        $region23: #{tpu_custom_call.1} parent=11 // pred_region
          %s196 = ssub.s32 1024, 1024
          %197 = vsyncadd [#allocation9], %s196
          %s198 = sshll.u32 [#allocation8], 4
          %s199 = int_to_ptr.vmem [resolvable:$true] %s198
          %204 = dma.hbm_to_vmem [thread:$0]  %s3, 1024, %s199, [#allocation9], 64, 64, 4
        $region24: #{tpu_custom_call.1} parent=11 // pred_fallthru
          _
        // Predicated region
        $region25: #{tpu_custom_call.1} parent=11 // pred_check
          %p205 = pneg %p129
        $region26: #{tpu_custom_call.1} parent=11 // pred_check_branch
          %207 = sbr.rel (%p205) target = $region28
        $region27: #{tpu_custom_call.1} parent=11 // pred_region
          %s209 = ssub.s32 16, 16
          %210 = vsyncadd [#allocation9], %s209
          %s212 = sshll.u32 [#allocation10], 4
          %s213 = int_to_ptr.vmem [resolvable:$true] %s212
          %215 = dma.hbm_to_vmem [thread:$0]  %s4, 16, %s213, [#allocation9]
        $region28: #{tpu_custom_call.1} parent=11 // pred_fallthru
          _
      $region12: #{tpu_custom_call.1} parent=5 // pred_fallthru
        _
      %p216 = scmp.lt.s32.totalorder %s19, 2
      // Predicated region
      $region29: #{tpu_custom_call.1} parent=5 // pred_check
        %p217 = pneg %p216
      $region30: #{tpu_custom_call.1} parent=5 // pred_check_branch
        %219 = sbr.rel (%p217) target = $region32
      $region31: #{tpu_custom_call.1} parent=5 // pred_region
        // Predicated region
        $region33: #{tpu_custom_call.1} parent=31 // pred_check
          %p220 = pneg %p39
        $region34: #{tpu_custom_call.1} parent=31 // pred_check_branch
          %222 = sbr.rel (%p220) target = $region36
        $region35: #{tpu_custom_call.1} parent=31 // pred_region
          %s223 = sand.u32 %s29, 1
          %s224 = scalar_lea.sflag [#allocation3], %s223
          %s225 = sand.u32 %s29, 1
          %s226 = smul.addr %s225, 8
          %s227 = scalar_lea.vmem [#allocation2], %s226
          %s229 = ssub.s32 128, 128
          %230 = vsyncadd %s224, %s229
          %s231 = smul.addr %s19, 128
          %s232 = scalar_lea.hbm %s0, %s231
          %s234 = sshll.u32 %s227, 4
          %s235 = int_to_ptr.vmem [resolvable:$true] %s234
          %237 = dma.hbm_to_vmem [thread:$0]  %s232, 128, %s235, %s224
        $region36: #{tpu_custom_call.1} parent=31 // pred_fallthru
          _
      $region32: #{tpu_custom_call.1} parent=5 // pred_fallthru
        _
      %p238 = scmp.le.s32.totalorder 1, %s19
      %p239 = scmp.lt.s32.totalorder %s19, 3
      %p240 = pnand %p238, %p239
      %p241 = pneg %p240
      // Predicated region
      $region37: #{tpu_custom_call.1} parent=5 // pred_check
        _
      $region38: #{tpu_custom_call.1} parent=5 // pred_check_branch
        %243 = sbr.rel (%p240) target = $region40
      $region39: #{tpu_custom_call.1} parent=5 // pred_region
        %s244 = ssub.s32 %s19, 1
        %s245 = sand.u32 %s32, 1
        %s246 = scalar_lea.sflag [#allocation3], %s245
        %s247 = sand.u32 %s32, 1
        %s248 = smul.addr %s247, 8
        %s249 = scalar_lea.vmem [#allocation2], %s248
        // Predicated region
        $region41: #{tpu_custom_call.1} parent=39 // pred_check
          %p250 = pneg %p45
        $region42: #{tpu_custom_call.1} parent=39 // pred_check_branch
          %252 = sbr.rel (%p250) target = $region44
        $region43: #{tpu_custom_call.1} parent=39 // pred_region
          %253 = dma.done %s246, 128
        $region44: #{tpu_custom_call.1} parent=39 // pred_fallthru
          _
        // Predicated region
        $region45: #{tpu_custom_call.1} parent=39 // pred_check
          %p254 = pneg %p66
        $region46: #{tpu_custom_call.1} parent=39 // pred_check_branch
          %256 = sbr.rel (%p254) target = $region48
        $region47: #{tpu_custom_call.1} parent=39 // pred_region
          %257 = dma.done [#allocation6], 16
        $region48: #{tpu_custom_call.1} parent=39 // pred_fallthru
          _
        // Predicated region
        $region49: #{tpu_custom_call.1} parent=39 // pred_check
          %p258 = pneg %p87
        $region50: #{tpu_custom_call.1} parent=39 // pred_check_branch
          %260 = sbr.rel (%p258) target = $region52
        $region51: #{tpu_custom_call.1} parent=39 // pred_region
          %261 = dma.done [#allocation6], 16
        $region52: #{tpu_custom_call.1} parent=39 // pred_fallthru
          _
        // Predicated region
        $region53: #{tpu_custom_call.1} parent=39 // pred_check
          %p262 = pneg %p108
        $region54: #{tpu_custom_call.1} parent=39 // pred_check_branch
          %264 = sbr.rel (%p262) target = $region56
        $region55: #{tpu_custom_call.1} parent=39 // pred_region
          %265 = dma.done [#allocation9], 1024
        $region56: #{tpu_custom_call.1} parent=39 // pred_fallthru
          _
        // Predicated region
        $region57: #{tpu_custom_call.1} parent=39 // pred_check
          %p266 = pneg %p129
        $region58: #{tpu_custom_call.1} parent=39 // pred_check_branch
          %268 = sbr.rel (%p266) target = $region60
        $region59: #{tpu_custom_call.1} parent=39 // pred_region
          %269 = dma.done [#allocation9], 16
        $region60: #{tpu_custom_call.1} parent=39 // pred_fallthru
          _
        %s270 = sand.u32 %s32, 1
        %s271 = scalar_lea.sflag [#allocation3], %s270
        %s272 = sand.u32 %s32, 1
        %s273 = smul.addr %s272, 8
        %s274 = scalar_lea.vmem [#allocation2], %s273
        %p275 = pneg %p45
        %p276 = pneg %p42
        %p277 = pneg %p66
        %p278 = pneg %p63
        %p279 = pneg %p87
        %p280 = pneg %p84
        %p281 = pneg %p108
        %p282 = pneg %p105
        %p283 = pneg %p129
        %p284 = pneg %p126
        %p285 = pneg %p155
        %p286 = pneg %p152
        %s287 = sand.u32 %s142, 1
        %s288 = scalar_lea.sflag [#allocation4], %s287
        %s289 = sand.u32 %s142, 1
        %s290 = smul.addr %s289, 8
        %s291 = scalar_lea.vmem [#allocation11], %s290
        %v293 = vld [vmem:[%s249] sm:$0xff]
        %294 = vadd.xlane.f32.xlu0 %v293
        %v295 = vpop.xlane.xlu0 %294
        %v296 = vmul.f32 %v295, 0.03125
        %v297 = vsub.f32 %v293, %v296
        %v298 = vlaneseq
        %v299 = vand.u32 %v298, 127
        %vm300 = vcmp.lt.s32.totalorder %v299, 32
        %v301 = vsel %vm300, %v297, 0.0
        %v302 = vmul.f32 %v301, %v301
        %303 = vadd.xlane.f32.xlu0 %v302
        %v304 = vpop.xlane.xlu0 %303
        %v305 = vmul.f32 %v304, 0.032258064
        %v306 = vrsqrt.pop %v305
        %v307 = vmul.f32 %v305, %v306
        %vm308 = vcmp.eq.f32.partialorder %v305, inf
        %v309 = vsel %vm308, %v305, %v307
        %vm310 = vcmp.eq.f32.partialorder %v305, 0.0
        %v311 = vand.u32 %v305, 2147483648
        %v312 = vsel %vm310, %v311, %v309
        %v313 = vadd.f32 %v312, 1e-06
        %v314 = vrcp.pop %v313
        %v315 = vmul.f32 1.0, %v314
        %v316 = vld [vmem:[#allocation5] sm:$0x1]
        %v317 = vld [vmem:[#allocation7] sm:$0x1]
        %v319 = vlaneseq
        %v320 = vshrl.u32 %v319, 7
        %v321 = vsub.s32 0, %v320
        %v322 = vrot.slane %v316, %v321
        %v324 = vmul.f32 %v322, %v315
        %v325 = vmul.f32 %v301, %v324
        %v327 = vlaneseq
        %v328 = vshrl.u32 %v327, 7
        %v329 = vsub.s32 0, %v328
        %v330 = vrot.slane %v317, %v329
        %v332 = vadd.f32 %v325, %v330
        %v333 = vld [vmem:[#allocation8] sm:$0xf]
        %v334 = vld [vmem:[#allocation8 + $0x4] sm:$0xf]
        %v335 = vld [vmem:[#allocation8 + $0x8] sm:$0xf]
        %v336 = vld [vmem:[#allocation8 + $0xc] sm:$0xf]
        %v337 = vld [vmem:[#allocation8 + $0x10] sm:$0xf]
        %v338 = vld [vmem:[#allocation8 + $0x14] sm:$0xf]
        %v339 = vld [vmem:[#allocation8 + $0x18] sm:$0xf]
        %v340 = vld [vmem:[#allocation8 + $0x1c] sm:$0xf]
        %v341 = vld [vmem:[#allocation8 + $0x20] sm:$0xf]
        %v342 = vld [vmem:[#allocation8 + $0x24] sm:$0xf]
        %v343 = vld [vmem:[#allocation8 + $0x28] sm:$0xf]
        %v344 = vld [vmem:[#allocation8 + $0x2c] sm:$0xf]
        %v345 = vld [vmem:[#allocation8 + $0x30] sm:$0xf]
        %v346 = vld [vmem:[#allocation8 + $0x34] sm:$0xf]
        %v347 = vld [vmem:[#allocation8 + $0x38] sm:$0xf]
        %v348 = vld [vmem:[#allocation8 + $0x3c] sm:$0xf]
        %v349 = vpack.c.bf16 %v332, %v332
        %v350 = vld [vmem:[#allocation10] sm:$0x1]
        %v352 = vlaneseq
        %v353 = vshrl.u32 %v352, 7
        %v354 = vsub.s32 0, %v353
        %v355 = vrot.slane %v350, %v354
        %v373 = vunpack.c.l.b16 %v333
        %v374 = vunpack.c.l.b16 %v334
        %v375 = vunpack.c.l.b16 %v335
        %v376 = vunpack.c.l.b16 %v336
        %v377 = vunpack.c.l.b16 %v337
        %v378 = vunpack.c.l.b16 %v338
        %v379 = vunpack.c.l.b16 %v339
        %v380 = vunpack.c.l.b16 %v340
        %v381 = vunpack.c.l.b16 %v341
        %v382 = vunpack.c.l.b16 %v342
        %v383 = vunpack.c.l.b16 %v343
        %v384 = vunpack.c.l.b16 %v344
        %v385 = vunpack.c.l.b16 %v345
        %v386 = vunpack.c.l.b16 %v346
        %v387 = vunpack.c.l.b16 %v347
        %v388 = vunpack.c.l.b16 %v348
        %v389 = vpack.c.b16 %v374, %v373
        %v390 = vpack.c.b16 %v376, %v375
        %v391 = vpack.c.b16 %v378, %v377
        %v392 = vpack.c.b16 %v380, %v379
        %v393 = vpack.c.b16 %v382, %v381
        %v394 = vpack.c.b16 %v384, %v383
        %v395 = vpack.c.b16 %v386, %v385
        %v396 = vpack.c.b16 %v388, %v387
        %405 = vmatprep.subr.bf16.mxu0 0
        %406 = vmatpush1.bf16.msra.mxu0 %v389
        %407 = vmatprep.subr.bf16.mxu0 0
        %408 = vmatpush1.bf16.msra.mxu0 %v390
        %409 = vmatprep.subr.bf16.mxu0 0
        %410 = vmatpush1.bf16.msra.mxu0 %v391
        %411 = vmatprep.subr.bf16.mxu0 0
        %412 = vmatpush1.bf16.msra.mxu0 %v392
        %413 = vmatprep.subr.bf16.mxu0 0
        %414 = vmatpush1.bf16.msra.mxu0 %v393
        %415 = vmatprep.subr.bf16.mxu0 0
        %416 = vmatpush1.bf16.msra.mxu0 %v394
        %417 = vmatprep.subr.bf16.mxu0 0
        %418 = vmatpush1.bf16.msra.mxu0 %v395
        %419 = vmatprep.subr.bf16.mxu0 0
        %420 = vmatpush1.bf16.msra.mxu0 %v396
        %421 = vmatprep.subr.bf16.mxu0 0
        %422 = vmatpush1.bf16.msra.mxu0 0
        %423 = vmatprep.subr.bf16.mxu0 0
        %424 = vmatpush1.bf16.msra.mxu0 0
        %425 = vmatprep.subr.bf16.mxu0 0
        %426 = vmatpush1.bf16.msra.mxu0 0
        %427 = vmatprep.subr.bf16.mxu0 0
        %428 = vmatpush1.bf16.msra.mxu0 0
        %429 = vmatprep.subr.bf16.mxu0 0
        %430 = vmatpush1.bf16.msra.mxu0 0
        %431 = vmatprep.subr.bf16.mxu0 0
        %432 = vmatpush1.bf16.msra.mxu0 0
        %433 = vmatprep.subr.bf16.mxu0 0
        %434 = vmatpush1.bf16.msra.mxu0 0
        %435 = vmatprep.subr.bf16.mxu0 0
        %436 = vmatpush1.bf16.msra.mxu0 0
        %437 = vmatprep.mubr.bf16.mxu0 0
        %438 = vmatmul.mubr.bf16.gmra.mrb[0].mxu0 %v349
        %v439 = vpop.f32.mrb[0].mxu0
        %v440 = vadd.f32 %v355, %v439
        %v441 = vpop.f32.mrb[0].mxu0
        %v442 = vpop.f32.mrb[0].mxu0
        %v443 = vpop.f32.mrb[0].mxu0
        %444 = vdwg.mxu0
        %v445 = vadd.f32 %v293, %v440
        %446 = vst [vmem:[%s291] sm:$0xff] %v445
        %s447 = sand.u32 %s142, 1
        %s448 = scalar_lea.sflag [#allocation4], %s447
        %s449 = sand.u32 %s142, 1
        %s450 = smul.addr %s449, 8
        %s451 = scalar_lea.vmem [#allocation11], %s450
        // Predicated region
        $region61: #{tpu_custom_call.1} parent=39 // pred_check
          %p452 = pneg %p152
        $region62: #{tpu_custom_call.1} parent=39 // pred_check_branch
          %454 = sbr.rel (%p452) target = $region64
        $region63: #{tpu_custom_call.1} parent=39 // pred_region
          %s456 = ssub.s32 128, 128
          %457 = vsyncadd %s448, %s456
          %s458 = smul.addr %s24, 128
          %s459 = scalar_lea.hbm %s5, %s458
          %s461 = sshll.u32 %s451, 4
          %s462 = int_to_ptr.vmem [resolvable:$true] %s461
          %464 = dma.vmem_to_hbm [thread:$0]  %s462, 128, %s459, %s448
        $region64: #{tpu_custom_call.1} parent=39 // pred_fallthru
          _
      $region40: #{tpu_custom_call.1} parent=5 // pred_fallthru
        _
      %p465 = scmp.le.s32.totalorder 2, %s19
      // Predicated region
      $region65: #{tpu_custom_call.1} parent=5 // pred_check
        %p466 = pneg %p465
      $region66: #{tpu_custom_call.1} parent=5 // pred_check_branch
        %468 = sbr.rel (%p466) target = $region68
      $region67: #{tpu_custom_call.1} parent=5 // pred_region
        %s469 = ssub.s32 %s19, 2
        // Predicated region
        $region69: #{tpu_custom_call.1} parent=67 // pred_check
          %p470 = pneg %p158
        $region70: #{tpu_custom_call.1} parent=67 // pred_check_branch
          %472 = sbr.rel (%p470) target = $region72
        $region71: #{tpu_custom_call.1} parent=67 // pred_region
          %s473 = sand.u32 %s143, 1
          %s474 = scalar_lea.sflag [#allocation4], %s473
          %s475 = sand.u32 %s143, 1
          %s476 = smul.addr %s475, 8
          %s477 = scalar_lea.vmem [#allocation11], %s476
          %478 = dma.done %s474, 128
        $region72: #{tpu_custom_call.1} parent=67 // pred_fallthru
          _
      $region68: #{tpu_custom_call.1} parent=5 // pred_fallthru
        _
    $region6: #{tpu_custom_call.1} parent=1 // loop_footer
      %s23 = sadd.s32 1, %s19
    $region7: #{tpu_custom_call.1} parent=1 // loop_footer_branch
      %18 = sbr.rel target = $region3
    $region8: #{tpu_custom_call.1} parent=1 // loop_exit
      _
    %479 = vsyncpa [#allocation3], 1
    %s480 = scalar_lea.sflag [#allocation3], 1
    %481 = vsyncpa %s480, 1
    %482 = vsyncpa [#allocation6], 1
    %483 = vsyncpa [#allocation9], 1
    %484 = vsyncpa [#allocation4], 1
    %s485 = scalar_lea.sflag [#allocation4], 1
    %486 = vsyncpa %s485, 1

</llo_original>
